<compile_context>
chip_gen: v6e
topology: v6e:2x2x1
jax: 0.10.0
libtpu: 0.0.40
codegen_flags: <defaults>
</compile_context>

<pallas_src>
import functools
import math

import jax
import jax.numpy as jnp
from jax.experimental import pallas as pl
from jax.experimental.pallas import tpu as pltpu

_LN2 = math.log(2.0)


def _mmgn_kernel(x_ref, vsq_ref, wt_ref, w_ref, b_ref, a_ref, o_ref, acc_ref):
    """Grid = (batch_tiles, num_layers); one layer's weights streamed per step.

    x_ref   : [TB, Dp]    bf16  (batch tile, padded feature dim)
    vsq_ref : [Dp, Dp]    bf16  (padded V^T V, constant across the grid)
    wt_ref  : [1, Dp, Hp] bf16  (W_k^T — pre-transposed, layout-native GEMM)
    w_ref   : [1, Hp, Dp] bf16  (W_k)
    b_ref   : [1, 1, Hp]  f32
    a_ref   : [1, Dp]     f32
    o_ref   : [TB, Dp]    f32
    acc_ref : [TB, Dp]    f32 scratch accumulator (lives across the layer axis)
    """
    k = pl.program_id(1)
    x = x_ref[...]                                            # bf16 [TB, Dp]

    @pl.when(k == 0)
    def _init():
        acc_ref[...] = a_ref[...] + jnp.dot(
            x, vsq_ref[...], preferred_element_type=jnp.float32)

    # z = x @ W_k^T + b_k    (bf16 MXU, f32 accumulation)
    z = jnp.dot(x, wt_ref[0], preferred_element_type=jnp.float32) + b_ref[0]

    # Stable logcosh: |z| + log1p(exp(-2|z|)) - log(2); exactly 0 at z==0 (so the
    # zero-padded H columns contribute nothing) and never overflows f32
    # (naive log(cosh(z)) overflows for |z| > ~88.7).
    az = jnp.abs(z)
    logcosh = az + jnp.log1p(jnp.exp(-2.0 * az)) - jnp.float32(_LN2)
    s = jnp.sum(logcosh, axis=1, keepdims=True)               # [TB, 1]

    sigma = jnp.tanh(z)
    term = jnp.dot(sigma.astype(w_ref.dtype), w_ref[0],
                   preferred_element_type=jnp.float32)        # [TB, Dp]
    acc_ref[...] += s * term

    @pl.when(k == pl.num_programs(1) - 1)
    def _finalize():
        o_ref[...] = acc_ref[...].astype(o_ref.dtype)


def _round_up(v, m):
    return ((v + m - 1) // m) * m


def mmgn_forward(x, V_weight, W_stack, b_stack, a, *, batch_tile=None):
    """Wrapper: pad to TPU-friendly shapes, precompute V^T V, run fused kernel."""
    B, D = x.shape
    L, H, _ = W_stack.shape

    f32, bf16 = jnp.float32, jnp.bfloat16

    Dp = _round_up(D, 128)                 # feature dim lives on the lane axis
    Hp = _round_up(H, 128)
    if batch_tile is None:
        # MXU-shaped batch tile for real sizes; shrink for tiny demo batches.
        batch_tile = min(256, _round_up(B, 8))
    TB = batch_tile
    Bp = _round_up(B, TB)

    # Cheap XLA-side glue: V^T V + zero-padding; weights also pre-transposed so
    # neither GEMM needs an in-kernel relayout.
    vsq = V_weight.astype(f32).T @ V_weight.astype(f32)                 # [D, D]
    vsq_p = jnp.zeros((Dp, Dp), f32).at[:D, :D].set(vsq).astype(bf16)
    x_p = jnp.zeros((Bp, Dp), f32).at[:B, :D].set(x.astype(f32)).astype(bf16)
    W_p = jnp.zeros((L, Hp, Dp), f32).at[:, :H, :D].set(W_stack.astype(f32))
    Wt_p = jnp.transpose(W_p, (0, 2, 1)).astype(bf16)                   # [L, Dp, Hp]
    W_pb = W_p.astype(bf16)                                             # [L, Hp, Dp]
    b_p = jnp.zeros((L, 1, Hp), f32).at[:, 0, :H].set(b_stack.astype(f32))
    a_p = jnp.zeros((1, Dp), f32).at[0, :D].set(a.astype(f32))

    grid = (Bp // TB, L)

    cost = pl.CostEstimate(
        flops=int(2 * Bp * Dp * Dp + L * 4 * Bp * Hp * Dp),
        transcendentals=int(3 * L * Bp * Hp),
        bytes_accessed=int(x_p.size * 2 + vsq_p.size * 2 + Wt_p.size * 2
                           + W_pb.size * 2 + b_p.size * 4 + a_p.size * 4
                           + Bp * Dp * 4),
    )

    out_p = pl.pallas_call(
        _mmgn_kernel,
        out_shape=jax.ShapeDtypeStruct((Bp, Dp), f32),
        grid=grid,
        in_specs=[
            pl.BlockSpec((TB, Dp), lambda i, k: (i, 0)),        # x (resident over k)
            pl.BlockSpec((Dp, Dp), lambda i, k: (0, 0)),        # V^T V (constant)
            pl.BlockSpec((1, Dp, Hp), lambda i, k: (k, 0, 0)),  # W_k^T (streamed)
            pl.BlockSpec((1, Hp, Dp), lambda i, k: (k, 0, 0)),  # W_k   (streamed)
            pl.BlockSpec((1, 1, Hp), lambda i, k: (k, 0, 0)),   # b_k
            pl.BlockSpec((1, Dp), lambda i, k: (0, 0)),         # a (constant)
        ],
        out_specs=pl.BlockSpec((TB, Dp), lambda i, k: (i, 0)),
        scratch_shapes=[pltpu.VMEM((TB, Dp), f32)],
        compiler_params=pltpu.CompilerParams(
            dimension_semantics=("parallel", "arbitrary"),
            vmem_limit_bytes=64 * 1024 * 1024,
        ),
        cost_estimate=cost,
    )(x_p, vsq_p, Wt_p, W_pb, b_p, a_p)

    return out_p[:B, :D]


def mmgn_reference(x, V_weight, W_stack, b_stack, a):
    """Pure-JAX f32 reference mirroring the PyTorch forward."""
    B = x.shape[0]
    out = jnp.broadcast_to(a[None, :], (B, a.shape[0]))
    vsq = V_weight.T @ V_weight
    out = out + x @ vsq
    for k in range(W_stack.shape[0]):
        z = x @ W_stack[k].T + b_stack[k]
        s = jnp.sum(jnp.log(jnp.cosh(z)), axis=1)
        sigma = jnp.tanh(z)
        term = sigma @ W_stack[k]
        out = out + s[:, None] * term
    return out


if __name__ == "__main__":
    # Small, deterministic setup consistent with M_MGN(input_dim, hidden_dim, num_layers).
    B, D, H, L = 8, 16, 32, 3
    key = jax.random.PRNGKey(0)
    kx, kv, kw, kb, ka = jax.random.split(key, 5)

    x = jax.random.normal(kx, (B, D), dtype=jnp.float32)

    # Orthogonal init for V (matches nn.init.orthogonal_).
    V_weight = jax.nn.initializers.orthogonal()(kv, (D, D), jnp.float32)
    # Linear-layer weights/biases (deterministic synthetic init).
    W_stack = jax.random.normal(kw, (L, H, D), dtype=jnp.float32) * 0.1
    b_stack = jax.random.normal(kb, (L, H), dtype=jnp.float32) * 0.1
    a = jax.random.normal(ka, (D,), dtype=jnp.float32)

    out = mmgn_forward(x, V_weight, W_stack, b_stack, a)
    jax.block_until_ready(out)

    ref = mmgn_reference(x, V_weight, W_stack, b_stack, a)
    assert out.shape == (B, D)
    # bf16 MXU operands -> relaxed tolerance vs the pure-f32 reference.
    assert jnp.allclose(out, ref, atol=3e-2, rtol=3e-2), (
        f"max abs err {jnp.max(jnp.abs(out - ref))}")

    print("KERNEL_OK")
</pallas_src>

<mosaic_0001>
module attributes {stable_mosaic.version = 11 : i64} {
  func.func @_mmgn_kernel(%arg0: i32, %arg1: i32, %arg2: memref<8x128xbf16, #tpu.memory_space<vmem>>, %arg3: memref<128x128xbf16, #tpu.memory_space<vmem>>, %arg4: memref<1x128x128xbf16, #tpu.memory_space<vmem>>, %arg5: memref<1x128x128xbf16, #tpu.memory_space<vmem>>, %arg6: memref<1x1x128xf32, #tpu.memory_space<vmem>>, %arg7: memref<1x128xf32, #tpu.memory_space<vmem>>, %arg8: memref<8x128xf32, #tpu.memory_space<vmem>>, %arg9: memref<8x128xf32, #tpu.memory_space<vmem>>) attributes {dimension_semantics = [#tpu.dimension_semantics<parallel>, #tpu.dimension_semantics<arbitrary>], iteration_bounds = array<i64: 1, 3>, scalar_prefetch = 0 : i64, scratch_operands = 1 : i64, tpu.core_type = #tpu.core_type<tc>, window_params = [{transform_indices = @transform_0, window_bounds = array<i64: 8, 128>}, {pipeline_mode = #tpu.pipeline_mode<synchronous>, transform_indices = @transform_1, window_bounds = array<i64: 128, 128>}, {transform_indices = @transform_2, window_bounds = array<i64: 1, 128, 128>}, {transform_indices = @transform_3, window_bounds = array<i64: 1, 128, 128>}, {transform_indices = @transform_4, window_bounds = array<i64: 1, 1, 128>}, {pipeline_mode = #tpu.pipeline_mode<synchronous>, transform_indices = @transform_5, window_bounds = array<i64: 1, 128>}, {transform_indices = @transform_6, window_bounds = array<i64: 8, 128>}]} {
    %c0 = arith.constant 0 : index
    %c0_0 = arith.constant 0 : index
    %0 = vector.load %arg2[%c0, %c0_0] : memref<8x128xbf16, #tpu.memory_space<vmem>>, vector<8x128xbf16>
    %c0_i32 = arith.constant 0 : i32
    %1 = arith.cmpi eq, %arg1, %c0_i32 : i32
    %2 = arith.extui %1 : i1 to i32
    %c0_i32_1 = arith.constant 0 : i32
    %3 = arith.cmpi ne, %2, %c0_i32_1 : i32
    scf.if %3 {
      %c0_20 = arith.constant 0 : index
      %c0_21 = arith.constant 0 : index
      %34 = vector.load %arg7[%c0_20, %c0_21] : memref<1x128xf32, #tpu.memory_space<vmem>>, vector<1x128xf32>
      %c0_22 = arith.constant 0 : index
      %c0_23 = arith.constant 0 : index
      %35 = vector.load %arg3[%c0_22, %c0_23] : memref<128x128xbf16, #tpu.memory_space<vmem>>, vector<128x128xbf16>
      %cst_24 = arith.constant dense<0.000000e+00> : vector<8x128xf32>
      %36 = tpu.matmul %0, %35, %cst_24 {dimension_numbers = #tpu.dot_dimension_numbers<[1], [0], [0], [1], [0, 0, 1, 1], [], []>} : vector<8x128xbf16>, vector<128x128xbf16>, vector<8x128xf32> -> vector<8x128xf32>
      %37 = vector.broadcast %34 : vector<1x128xf32> to vector<8x128xf32>
      %38 = arith.addf %37, %36 : vector<8x128xf32>
      %c0_25 = arith.constant 0 : index
      %c0_26 = arith.constant 0 : index
      %39 = vector.load %arg9[%c0_25, %c0_26] : memref<8x128xf32, #tpu.memory_space<vmem>>, vector<8x128xf32>
      tpu.vector_store %arg9[%c0_25, %c0_26], %38 {strides = array<i32>} : memref<8x128xf32, #tpu.memory_space<vmem>>, vector<8x128xf32>,
    } else {
    }
    %c0_2 = arith.constant 0 : index
    %c0_3 = arith.constant 0 : index
    %c0_4 = arith.constant 0 : index
    %4 = vector.load %arg4[%c0_2, %c0_3, %c0_4] : memref<1x128x128xbf16, #tpu.memory_space<vmem>>, vector<1x128x128xbf16>
    %5 = vector.shape_cast %4 : vector<1x128x128xbf16> to vector<128x128xbf16>
    %cst = arith.constant dense<0.000000e+00> : vector<8x128xf32>
    %6 = tpu.matmul %0, %5, %cst {dimension_numbers = #tpu.dot_dimension_numbers<[1], [0], [0], [1], [0, 0, 1, 1], [], []>} : vector<8x128xbf16>, vector<128x128xbf16>, vector<8x128xf32> -> vector<8x128xf32>
    %c0_5 = arith.constant 0 : index
    %c0_6 = arith.constant 0 : index
    %c0_7 = arith.constant 0 : index
    %7 = vector.load %arg6[%c0_5, %c0_6, %c0_7] : memref<1x1x128xf32, #tpu.memory_space<vmem>>, vector<1x1x128xf32>
    %8 = vector.shape_cast %7 : vector<1x1x128xf32> to vector<1x128xf32>
    %9 = vector.broadcast %8 : vector<1x128xf32> to vector<8x128xf32>
    %10 = arith.addf %6, %9 : vector<8x128xf32>
    %11 = math.absf %10 : vector<8x128xf32>
    %cst_8 = arith.constant -2.000000e+00 : f32
    %12 = vector.broadcast %cst_8 : f32 to vector<8x128xf32>
    %13 = arith.mulf %12, %11 : vector<8x128xf32>
    %14 = math.exp %13 : vector<8x128xf32>
    %15 = math.log1p %14 : vector<8x128xf32>
    %16 = arith.addf %11, %15 : vector<8x128xf32>
    %cst_9 = arith.constant 0.693147182 : f32
    %17 = vector.broadcast %cst_9 : f32 to vector<8x128xf32>
    %18 = arith.subf %16, %17 : vector<8x128xf32>
    %cst_10 = arith.constant dense<0.000000e+00> : vector<8xf32>
    %19 = vector.multi_reduction <add>, %18, %cst_10 [1] : vector<8x128xf32> to vector<8xf32>
    %20 = vector.shape_cast %19 : vector<8xf32> to vector<8x1xf32>
    %21 = math.tanh %10 : vector<8x128xf32>
    %22 = arith.truncf %21 : vector<8x128xf32> to vector<8x128xbf16>
    %c0_11 = arith.constant 0 : index
    %c0_12 = arith.constant 0 : index
    %c0_13 = arith.constant 0 : index
    %23 = vector.load %arg5[%c0_11, %c0_12, %c0_13] : memref<1x128x128xbf16, #tpu.memory_space<vmem>>, vector<1x128x128xbf16>
    %24 = vector.shape_cast %23 : vector<1x128x128xbf16> to vector<128x128xbf16>
    %cst_14 = arith.constant dense<0.000000e+00> : vector<8x128xf32>
    %25 = tpu.matmul %22, %24, %cst_14 {dimension_numbers = #tpu.dot_dimension_numbers<[1], [0], [0], [1], [0, 0, 1, 1], [], []>} : vector<8x128xbf16>, vector<128x128xbf16>, vector<8x128xf32> -> vector<8x128xf32>
    %c0_15 = arith.constant 0 : index
    %c0_16 = arith.constant 0 : index
    %26 = vector.load %arg9[%c0_15, %c0_16] : memref<8x128xf32, #tpu.memory_space<vmem>>, vector<8x128xf32>
    %27 = vector.broadcast %20 : vector<8x1xf32> to vector<8x128xf32>
    %28 = arith.mulf %27, %25 : vector<8x128xf32>
    %29 = arith.addf %26, %28 : vector<8x128xf32>
    %c0_17 = arith.constant 0 : index
    %c0_18 = arith.constant 0 : index
    %30 = vector.load %arg9[%c0_17, %c0_18] : memref<8x128xf32, #tpu.memory_space<vmem>>, vector<8x128xf32>
    tpu.vector_store %arg9[%c0_17, %c0_18], %29 {strides = array<i32>} : memref<8x128xf32, #tpu.memory_space<vmem>>, vector<8x128xf32>,
    %c2_i32 = arith.constant 2 : i32
    %31 = arith.cmpi eq, %arg1, %c2_i32 : i32
    %32 = arith.extui %31 : i1 to i32
    %c0_i32_19 = arith.constant 0 : i32
    %33 = arith.cmpi ne, %32, %c0_i32_19 : i32
    scf.if %33 {
      %c0_20 = arith.constant 0 : index
      %c0_21 = arith.constant 0 : index
      %34 = vector.load %arg9[%c0_20, %c0_21] : memref<8x128xf32, #tpu.memory_space<vmem>>, vector<8x128xf32>
      %c0_22 = arith.constant 0 : index
      %c0_23 = arith.constant 0 : index
      %35 = vector.load %arg8[%c0_22, %c0_23] : memref<8x128xf32, #tpu.memory_space<vmem>>, vector<8x128xf32>
      tpu.vector_store %arg8[%c0_22, %c0_23], %34 {strides = array<i32>} : memref<8x128xf32, #tpu.memory_space<vmem>>, vector<8x128xf32>,
    } else {
    }
    return
  }
  func.func @transform_0(%arg0: i32, %arg1: i32) -> (i32, i32) {
    %c0_i32 = arith.constant 0 : i32
    %c0_i32_0 = arith.constant 0 : i32
    return %arg0, %c0_i32 : i32, i32
  }
  func.func @transform_1(%arg0: i32, %arg1: i32) -> (i32, i32) {
    %c0_i32 = arith.constant 0 : i32
    %c0_i32_0 = arith.constant 0 : i32
    %c0_i32_1 = arith.constant 0 : i32
    return %c0_i32, %c0_i32_0 : i32, i32
  }
  func.func @transform_2(%arg0: i32, %arg1: i32) -> (i32, i32, i32) {
    %c0_i32 = arith.constant 0 : i32
    %c0_i32_0 = arith.constant 0 : i32
    %c0_i32_1 = arith.constant 0 : i32
    return %arg1, %c0_i32, %c0_i32_0 : i32, i32, i32
  }
  func.func @transform_3(%arg0: i32, %arg1: i32) -> (i32, i32, i32) {
    %c0_i32 = arith.constant 0 : i32
    %c0_i32_0 = arith.constant 0 : i32
    %c0_i32_1 = arith.constant 0 : i32
    return %arg1, %c0_i32, %c0_i32_0 : i32, i32, i32
  }
  func.func @transform_4(%arg0: i32, %arg1: i32) -> (i32, i32, i32) {
    %c0_i32 = arith.constant 0 : i32
    %c0_i32_0 = arith.constant 0 : i32
    %c0_i32_1 = arith.constant 0 : i32
    return %arg1, %c0_i32, %c0_i32_0 : i32, i32, i32
  }
  func.func @transform_5(%arg0: i32, %arg1: i32) -> (i32, i32) {
    %c0_i32 = arith.constant 0 : i32
    %c0_i32_0 = arith.constant 0 : i32
    %c0_i32_1 = arith.constant 0 : i32
    return %c0_i32, %c0_i32_0 : i32, i32
  }
  func.func @transform_6(%arg0: i32, %arg1: i32) -> (i32, i32) {
    %c0_i32 = arith.constant 0 : i32
    %c0_i32_0 = arith.constant 0 : i32
    return %arg0, %c0_i32 : i32, i32
  }
}

</mosaic_0001>

<llo_original>
// kernel: tpu_custom_call.1
$region0: #{tpu_custom_call.1}
  #allocation0 [shape = 'u32[]', space=smem, size = 0x4, offset = 0x4, fixed_abs, tag = 'smem constant byte address 0x4 - core index']
  #allocation1 [shape = 'u32[144,128]{1,0:T(1,128)}', space=vmem, size = 0x12000, scoped, tag = 'internal scratch']
  #allocation2 [shape = 'f32[8,128]{1,0:T(8,128)}', space=vmem, size = 0x1000, scoped, tag = 'scratch operand']
  %s0 = inlined_call_operand.hbm [shape: bf16[8,128], index: 0, kind: input, shape index: {}]
  %s1 = inlined_call_operand.hbm [shape: bf16[128,128], index: 1, kind: input, shape index: {}]
  %s2 = inlined_call_operand.hbm [shape: bf16[3,128,128], index: 2, kind: input, shape index: {}]
  %s3 = inlined_call_operand.hbm [shape: bf16[3,128,128], index: 3, kind: input, shape index: {}]
  %s4 = inlined_call_operand.vmem [shape: f32[3,1,128], index: 4, kind: input, shape index: {}]
  %s5 = inlined_call_operand.vmem [shape: f32[1,128], index: 5, kind: input, shape index: {}]
  %s6 = inlined_call_operand.hbm [shape: f32[8,128], index: 6, kind: output, shape index: {}]
  %s7 = sld [smem:[#allocation0]]
  $region81: #{tpu_custom_call.1} parent=0
    _
  %s9 = ssub.s32 1, %s7
  %s10 = scalar_select 0, %s9, %s7
  $region1: #{tpu_custom_call.1} parent=0
    #allocation3 [shape = 'u8[2048]{0}', space=vmem, size = 0x800, scoped, tag = 'input window, operand 0, single buffered']
    #allocation4 [shape = 's32[2]{0}', space=sflag, size = 0x8, scoped, tag = 'scoped memory for tpu_custom_call.1']
    #allocation5 [shape = 's32[2]{0}', space=sflag, size = 0x8, scoped, tag = 'scoped memory for tpu_custom_call.1']
    #allocation6 [shape = 'u8[32768]{0}', space=vmem, size = 0x8000, scoped, tag = 'input window, operand 1, single buffered']
    #allocation7 [shape = 's32[1]{0}', space=sflag, size = 0x4, scoped, tag = 'scoped memory for tpu_custom_call.1']
    #allocation8 [shape = 'u8[65536]{0}', space=vmem, size = 0x10000, scoped, tag = 'input window, operand 2']
    #allocation9 [shape = 'u8[65536]{0}', space=vmem, size = 0x10000, scoped, tag = 'input window, operand 3']
    #allocation10 [shape = 'u8[4096]{0}', space=vmem, size = 0x1000, scoped, tag = 'output window, operand 0, single buffered']
    %11 = vsyncpa [#allocation4], 0
    %12 = vsyncpa [#allocation7], 0
    %13 = vsyncpa [#allocation5], 0
    loop: start=0, step=1, limit=5
    $region2: #{tpu_custom_call.1} parent=1 // loop_pre_header
      _
    $region3: #{tpu_custom_call.1} parent=1 // loop_header
      %s15 = sphi 0, %s19
      %p16 = scmp.ge.s32.totalorder %s15, 5
      %s22 = sphi 0, %s34
      %s23 = sphi 0, %s30
      %s24 = sphi 0, %s22
      %s25 = sphi 0, %s23
      %s26 = sphi 0, %s24
      %s27 = sphi 0, %s25
      %s37 = sphi 0, %s39
      %s40 = sphi 0, %s37
      %s41 = sphi 0, %s40
      %s57 = sphi 0, %s41
      %s61 = sphi 0, %s61
      %s63 = sphi 0, %s61
      %s64 = sphi 0, %s63
      %s78 = sphi 0, %s64
      %s84 = sphi 0, %s86
      %s87 = sphi 0, %s84
      %s88 = sphi 0, %s87
      %s104 = sphi 0, %s88
      %s110 = sphi 0, %s112
      %s113 = sphi 0, %s110
      %s114 = sphi 0, %s113
      %s130 = sphi 0, %s114
      %s136 = sphi 0, %s138
      %s139 = sphi 0, %s136
      %s140 = sphi 0, %s139
      %s156 = sphi 0, %s140
      %s160 = sphi 0, %s160
      %s162 = sphi 0, %s160
      %s163 = sphi 0, %s162
      %s177 = sphi 0, %s163
      %s183 = sphi 0, %s185
      %s186 = sphi 0, %s183
      %s187 = sphi 0, %s186
      %s203 = sphi 0, %s187
    $region4: #{tpu_custom_call.1} parent=1 // loop_header_branch
      %18 = sbr.rel (%p16) target = $region8
    $region5: #{tpu_custom_call.1} parent=1 // loop_body
      %s20 = ssub.s32 %s15, 1
      %s21 = ssub.s32 %s15, 2
      %s28 = sadd.s32 1, %s23
      %p29 = scmp.ge.s32.totalorder %s28, 3
      %s30 = scalar_select %p29, 0, %s28
      %s31 = sadd.s32 1, %s22
      %s32 = scalar_select %p29, %s31, %s22
      %p33 = scmp.ge.s32.totalorder %s32, 1
      %s34 = scalar_select %p33, 0, %s32
      %s35 = ssub.s32 %s22, %s34
      %p36 = scmp.eq.s32.totalorder %s35, 0
      %s38 = sadd.s32 %s37, 1
      %s39 = scalar_select %p36, %s37, %s38
      %p42 = pneg %p36
      %p43 = scmp.eq.s32.totalorder %s15, 2
      %p44 = por %p42, %p43
      %p45 = scmp.ne.s32.totalorder %s37, %s40
      %p46 = scmp.eq.s32.totalorder %s15, 0
      %p47 = por %p45, %p46
      %p48 = scmp.ne.s32.totalorder %s37, %s40
      %p49 = scmp.eq.s32.totalorder %s20, 2
      %p50 = por %p48, %p49
      %p51 = scmp.ne.s32.totalorder %s40, %s41
      %p52 = scmp.eq.s32.totalorder %s20, 0
      %p53 = por %p51, %p52
      %p54 = scmp.ne.s32.totalorder %s40, %s41
      %p55 = scmp.eq.s32.totalorder %s21, 2
      %p56 = por %p54, %p55
      %p58 = scmp.ne.s32.totalorder %s41, %s57
      %p59 = scmp.eq.s32.totalorder %s21, 0
      %p60 = por %p58, %p59
      %s62 = sadd.s32 %s61, 1
      %p65 = scmp.eq.s32.totalorder %s15, 2
      %p66 = scmp.ne.s32.totalorder %s61, %s63
      %p67 = scmp.eq.s32.totalorder %s15, 0
      %p68 = por %p66, %p67
      %p69 = scmp.ne.s32.totalorder %s61, %s63
      %p70 = scmp.eq.s32.totalorder %s20, 2
      %p71 = por %p69, %p70
      %p72 = scmp.ne.s32.totalorder %s63, %s64
      %p73 = scmp.eq.s32.totalorder %s20, 0
      %p74 = por %p72, %p73
      %p75 = scmp.ne.s32.totalorder %s63, %s64
      %p76 = scmp.eq.s32.totalorder %s21, 2
      %p77 = por %p75, %p76
      %p79 = scmp.ne.s32.totalorder %s64, %s78
      %p80 = scmp.eq.s32.totalorder %s21, 0
      %p81 = por %p79, %p80
      %s82 = ssub.s32 %s23, %s30
      %p83 = scmp.eq.s32.totalorder %s82, 0
      %s85 = sadd.s32 %s84, 1
      %s86 = scalar_select %p83, %s84, %s85
      %p89 = pneg %p83
      %p90 = scmp.eq.s32.totalorder %s15, 2
      %p91 = por %p89, %p90
      %p92 = scmp.ne.s32.totalorder %s84, %s87
      %p93 = scmp.eq.s32.totalorder %s15, 0
      %p94 = por %p92, %p93
      %p95 = scmp.ne.s32.totalorder %s84, %s87
      %p96 = scmp.eq.s32.totalorder %s20, 2
      %p97 = por %p95, %p96
      %p98 = scmp.ne.s32.totalorder %s87, %s88
      %p99 = scmp.eq.s32.totalorder %s20, 0
      %p100 = por %p98, %p99
      %p101 = scmp.ne.s32.totalorder %s87, %s88
      %p102 = scmp.eq.s32.totalorder %s21, 2
      %p103 = por %p101, %p102
      %p105 = scmp.ne.s32.totalorder %s88, %s104
      %p106 = scmp.eq.s32.totalorder %s21, 0
      %p107 = por %p105, %p106
      %s108 = ssub.s32 %s23, %s30
      %p109 = scmp.eq.s32.totalorder %s108, 0
      %s111 = sadd.s32 %s110, 1
      %s112 = scalar_select %p109, %s110, %s111
      %p115 = pneg %p109
      %p116 = scmp.eq.s32.totalorder %s15, 2
      %p117 = por %p115, %p116
      %p118 = scmp.ne.s32.totalorder %s110, %s113
      %p119 = scmp.eq.s32.totalorder %s15, 0
      %p120 = por %p118, %p119
      %p121 = scmp.ne.s32.totalorder %s110, %s113
      %p122 = scmp.eq.s32.totalorder %s20, 2
      %p123 = por %p121, %p122
      %p124 = scmp.ne.s32.totalorder %s113, %s114
      %p125 = scmp.eq.s32.totalorder %s20, 0
      %p126 = por %p124, %p125
      %p127 = scmp.ne.s32.totalorder %s113, %s114
      %p128 = scmp.eq.s32.totalorder %s21, 2
      %p129 = por %p127, %p128
      %p131 = scmp.ne.s32.totalorder %s114, %s130
      %p132 = scmp.eq.s32.totalorder %s21, 0
      %p133 = por %p131, %p132
      %s134 = ssub.s32 %s23, %s30
      %p135 = scmp.eq.s32.totalorder %s134, 0
      %s137 = sadd.s32 %s136, 1
      %s138 = scalar_select %p135, %s136, %s137
      %p141 = pneg %p135
      %p142 = scmp.eq.s32.totalorder %s15, 2
      %p143 = por %p141, %p142
      %p144 = scmp.ne.s32.totalorder %s136, %s139
      %p145 = scmp.eq.s32.totalorder %s15, 0
      %p146 = por %p144, %p145
      %p147 = scmp.ne.s32.totalorder %s136, %s139
      %p148 = scmp.eq.s32.totalorder %s20, 2
      %p149 = por %p147, %p148
      %p150 = scmp.ne.s32.totalorder %s139, %s140
      %p151 = scmp.eq.s32.totalorder %s20, 0
      %p152 = por %p150, %p151
      %p153 = scmp.ne.s32.totalorder %s139, %s140
      %p154 = scmp.eq.s32.totalorder %s21, 2
      %p155 = por %p153, %p154
      %p157 = scmp.ne.s32.totalorder %s140, %s156
      %p158 = scmp.eq.s32.totalorder %s21, 0
      %p159 = por %p157, %p158
      %s161 = sadd.s32 %s160, 1
      %p164 = scmp.eq.s32.totalorder %s15, 2
      %p165 = scmp.ne.s32.totalorder %s160, %s162
      %p166 = scmp.eq.s32.totalorder %s15, 0
      %p167 = por %p165, %p166
      %p168 = scmp.ne.s32.totalorder %s160, %s162
      %p169 = scmp.eq.s32.totalorder %s20, 2
      %p170 = por %p168, %p169
      %p171 = scmp.ne.s32.totalorder %s162, %s163
      %p172 = scmp.eq.s32.totalorder %s20, 0
      %p173 = por %p171, %p172
      %p174 = scmp.ne.s32.totalorder %s162, %s163
      %p175 = scmp.eq.s32.totalorder %s21, 2
      %p176 = por %p174, %p175
      %p178 = scmp.ne.s32.totalorder %s163, %s177
      %p179 = scmp.eq.s32.totalorder %s21, 0
      %p180 = por %p178, %p179
      %s181 = ssub.s32 %s22, %s34
      %p182 = scmp.eq.s32.totalorder %s181, 0
      %s184 = sadd.s32 %s183, 1
      %s185 = scalar_select %p182, %s183, %s184
      %p188 = pneg %p182
      %p189 = scmp.eq.s32.totalorder %s15, 2
      %p190 = por %p188, %p189
      %p191 = scmp.ne.s32.totalorder %s183, %s186
      %p192 = scmp.eq.s32.totalorder %s15, 0
      %p193 = por %p191, %p192
      %p194 = scmp.ne.s32.totalorder %s183, %s186
      %p195 = scmp.eq.s32.totalorder %s20, 2
      %p196 = por %p194, %p195
      %p197 = scmp.ne.s32.totalorder %s186, %s187
      %p198 = scmp.eq.s32.totalorder %s20, 0
      %p199 = por %p197, %p198
      %p200 = scmp.ne.s32.totalorder %s186, %s187
      %p201 = scmp.eq.s32.totalorder %s21, 2
      %p202 = por %p200, %p201
      %p204 = scmp.ne.s32.totalorder %s187, %s203
      %p205 = scmp.eq.s32.totalorder %s21, 0
      %p206 = por %p204, %p205
      %p207 = scmp.le.s32.totalorder 1, %s15
      %p208 = scmp.lt.s32.totalorder %s15, 4
      %p209 = pnand %p207, %p208
      %p210 = pneg %p209
      // Predicated region
      $region9: #{tpu_custom_call.1} parent=5 // pred_check
        _
      $region10: #{tpu_custom_call.1} parent=5 // pred_check_branch
        %212 = sbr.rel (%p209) target = $region12
      $region11: #{tpu_custom_call.1} parent=5 // pred_region
        %s213 = ssub.s32 %s15, 1
        // Predicated region
        $region13: #{tpu_custom_call.1} parent=11 // pred_check
          %p214 = pneg %p53
        $region14: #{tpu_custom_call.1} parent=11 // pred_check_branch
          %216 = sbr.rel (%p214) target = $region16
        $region15: #{tpu_custom_call.1} parent=11 // pred_region
          %s218 = ssub.s32 64, 64
          %219 = vsyncadd [#allocation4], %s218
          %s220 = smul.addr %s24, 64
          %s221 = scalar_lea.hbm %s0, %s220
          %s223 = sshll.u32 [#allocation3], 4
          %s224 = int_to_ptr.vmem [resolvable:$true] %s223
          %226 = dma.hbm_to_vmem [thread:$0]  %s221, 64, %s224, [#allocation4]
        $region16: #{tpu_custom_call.1} parent=11 // pred_fallthru
          _
        // Predicated region
        $region17: #{tpu_custom_call.1} parent=11 // pred_check
          %p227 = pneg %p74
        $region18: #{tpu_custom_call.1} parent=11 // pred_check_branch
          %229 = sbr.rel (%p227) target = $region20
        $region19: #{tpu_custom_call.1} parent=11 // pred_region
          %s231 = ssub.s32 1024, 1024
          %232 = vsyncadd [#allocation7], %s231
          %s233 = sshll.u32 [#allocation6], 4
          %s234 = int_to_ptr.vmem [resolvable:$true] %s233
          %239 = dma.hbm_to_vmem [thread:$0]  %s1, 1024, %s234, [#allocation7], 64, 64, 4
        $region20: #{tpu_custom_call.1} parent=11 // pred_fallthru
          _
        // Predicated region
        $region21: #{tpu_custom_call.1} parent=11 // pred_check
          %p240 = pneg %p173
        $region22: #{tpu_custom_call.1} parent=11 // pred_check_branch
          %242 = sbr.rel (%p240) target = $region24
        $region23: #{tpu_custom_call.1} parent=11 // pred_region
          _
        $region24: #{tpu_custom_call.1} parent=11 // pred_fallthru
          _
      $region12: #{tpu_custom_call.1} parent=5 // pred_fallthru
        _
      %p243 = scmp.lt.s32.totalorder %s15, 3
      // Predicated region
      $region25: #{tpu_custom_call.1} parent=5 // pred_check
        %p244 = pneg %p243
      $region26: #{tpu_custom_call.1} parent=5 // pred_check_branch
        %246 = sbr.rel (%p244) target = $region28
      $region27: #{tpu_custom_call.1} parent=5 // pred_region
        // Predicated region
        $region29: #{tpu_custom_call.1} parent=27 // pred_check
          %p247 = pneg %p94
        $region30: #{tpu_custom_call.1} parent=27 // pred_check_branch
          %249 = sbr.rel (%p247) target = $region32
        $region31: #{tpu_custom_call.1} parent=27 // pred_region
          %s250 = sand.u32 %s15, 1
          %s251 = scalar_lea.sflag [#allocation4], %s250
          %s252 = sand.u32 %s84, 1
          %s253 = smul.addr %s252, 64
          %s254 = scalar_lea.vmem [#allocation8], %s253
          %s256 = ssub.s32 1024, 1024
          %257 = vsyncadd %s251, %s256
          %s258 = smul.addr %s23, 16
          %s259 = smul.addr %s258, 64
          %s260 = scalar_lea.hbm %s2, %s259
          %s261 = sshll.u32 %s254, 4
          %s262 = int_to_ptr.vmem [resolvable:$true] %s261
          %267 = dma.hbm_to_vmem [thread:$0]  %s260, 1024, %s262, %s251, 64, 64, 4
        $region32: #{tpu_custom_call.1} parent=27 // pred_fallthru
          _
        // Predicated region
        $region33: #{tpu_custom_call.1} parent=27 // pred_check
          %p268 = pneg %p120
        $region34: #{tpu_custom_call.1} parent=27 // pred_check_branch
          %270 = sbr.rel (%p268) target = $region36
        $region35: #{tpu_custom_call.1} parent=27 // pred_region
          %s271 = sand.u32 %s15, 1
          %s272 = scalar_lea.sflag [#allocation4], %s271
          %s273 = sand.u32 %s110, 1
          %s274 = smul.addr %s273, 64
          %s275 = scalar_lea.vmem [#allocation9], %s274
          %s277 = ssub.s32 1024, 1024
          %278 = vsyncadd %s272, %s277
          %s279 = smul.addr %s23, 16
          %s280 = smul.addr %s279, 64
          %s281 = scalar_lea.hbm %s3, %s280
          %s282 = sshll.u32 %s275, 4
          %s283 = int_to_ptr.vmem [resolvable:$true] %s282
          %288 = dma.hbm_to_vmem [thread:$0]  %s281, 1024, %s283, %s272, 64, 64, 4
        $region36: #{tpu_custom_call.1} parent=27 // pred_fallthru
          _
        // Predicated region
        $region37: #{tpu_custom_call.1} parent=27 // pred_check
          %p289 = pneg %p146
        $region38: #{tpu_custom_call.1} parent=27 // pred_check_branch
          %291 = sbr.rel (%p289) target = $region40
        $region39: #{tpu_custom_call.1} parent=27 // pred_region
          %p292 = scmp.lt.s32.totalorder %s23, 2
          %s293 = scalar_select %p292, %s23, 2
          %s294 = scalar_lea.vmem %s4, %s293
        $region40: #{tpu_custom_call.1} parent=27 // pred_fallthru
          _
      $region28: #{tpu_custom_call.1} parent=5 // pred_fallthru
        _
      %p295 = scmp.le.s32.totalorder 1, %s15
      %p296 = scmp.lt.s32.totalorder %s15, 4
      %p297 = pnand %p295, %p296
      %p298 = pneg %p297
      // Predicated region
      $region41: #{tpu_custom_call.1} parent=5 // pred_check
        _
      $region42: #{tpu_custom_call.1} parent=5 // pred_check_branch
        %300 = sbr.rel (%p297) target = $region44
      $region43: #{tpu_custom_call.1} parent=5 // pred_region
        %s301 = ssub.s32 %s15, 1
        // Predicated region
        $region45: #{tpu_custom_call.1} parent=43 // pred_check
          %p302 = pneg %p53
        $region46: #{tpu_custom_call.1} parent=43 // pred_check_branch
          %304 = sbr.rel (%p302) target = $region48
        $region47: #{tpu_custom_call.1} parent=43 // pred_region
          %305 = dma.done [#allocation4], 64
        $region48: #{tpu_custom_call.1} parent=43 // pred_fallthru
          _
        // Predicated region
        $region49: #{tpu_custom_call.1} parent=43 // pred_check
          %p306 = pneg %p74
        $region50: #{tpu_custom_call.1} parent=43 // pred_check_branch
          %308 = sbr.rel (%p306) target = $region52
        $region51: #{tpu_custom_call.1} parent=43 // pred_region
          %309 = dma.done [#allocation7], 1024
        $region52: #{tpu_custom_call.1} parent=43 // pred_fallthru
          _
        %s310 = sand.u32 %s20, 1
        %s311 = scalar_lea.sflag [#allocation4], %s310
        %s312 = sand.u32 %s87, 1
        %s313 = smul.addr %s312, 64
        %s314 = scalar_lea.vmem [#allocation8], %s313
        // Predicated region
        $region53: #{tpu_custom_call.1} parent=43 // pred_check
          %p315 = pneg %p100
        $region54: #{tpu_custom_call.1} parent=43 // pred_check_branch
          %317 = sbr.rel (%p315) target = $region56
        $region55: #{tpu_custom_call.1} parent=43 // pred_region
          %318 = dma.done %s311, 1024
        $region56: #{tpu_custom_call.1} parent=43 // pred_fallthru
          _
        %s319 = sand.u32 %s20, 1
        %s320 = scalar_lea.sflag [#allocation4], %s319
        %s321 = sand.u32 %s113, 1
        %s322 = smul.addr %s321, 64
        %s323 = scalar_lea.vmem [#allocation9], %s322
        // Predicated region
        $region57: #{tpu_custom_call.1} parent=43 // pred_check
          %p324 = pneg %p126
        $region58: #{tpu_custom_call.1} parent=43 // pred_check_branch
          %326 = sbr.rel (%p324) target = $region60
        $region59: #{tpu_custom_call.1} parent=43 // pred_region
          %327 = dma.done %s320, 1024
        $region60: #{tpu_custom_call.1} parent=43 // pred_fallthru
          _
        %p328 = pneg %p53
        %p329 = pneg %p50
        %p330 = pneg %p74
        %p331 = pneg %p71
        %s332 = sand.u32 %s20, 1
        %s333 = scalar_lea.sflag [#allocation4], %s332
        %s334 = sand.u32 %s87, 1
        %s335 = smul.addr %s334, 64
        %s336 = scalar_lea.vmem [#allocation8], %s335
        %p337 = pneg %p100
        %p338 = pneg %p97
        %s339 = sand.u32 %s20, 1
        %s340 = scalar_lea.sflag [#allocation4], %s339
        %s341 = sand.u32 %s113, 1
        %s342 = smul.addr %s341, 64
        %s343 = scalar_lea.vmem [#allocation9], %s342
        %p344 = pneg %p126
        %p345 = pneg %p123
        %p346 = scmp.lt.s32.totalorder %s25, 2
        %s347 = scalar_select %p346, %s25, 2
        %s348 = scalar_lea.vmem %s4, %s347
        %p349 = pneg %p152
        %p350 = pneg %p149
        %p351 = pneg %p173
        %p352 = pneg %p170
        %p353 = pneg %p199
        %p354 = pneg %p196
        %p355 = scmp.lt.s32.totalorder %s25, 2
        %s356 = scalar_select %p355, %s25, 2
        %s357 = scalar_lea.vmem %s4, %s356
        %v359 = vld [vmem:[#allocation3] sm:$0xf]
        %p360 = scmp.eq.s32.totalorder %s25, 0
        // Predicated region
        $region61: #{tpu_custom_call.1} parent=43 // pred_check
          %p361 = pneg %p360
        $region62: #{tpu_custom_call.1} parent=43 // pred_check_branch
          %363 = sbr.rel (%p361) target = $region64
        $region63: #{tpu_custom_call.1} parent=43 // pred_region
          %v364 = vld [vmem:[%s5] sm:$0x1]
          %v365 = vld [vmem:[#allocation6] sm:$0xf]
          %v366 = vld [vmem:[#allocation6 + $0x4] sm:$0xf]
          %v367 = vld [vmem:[#allocation6 + $0x8] sm:$0xf]
          %v368 = vld [vmem:[#allocation6 + $0xc] sm:$0xf]
          %v369 = vld [vmem:[#allocation6 + $0x10] sm:$0xf]
          %v370 = vld [vmem:[#allocation6 + $0x14] sm:$0xf]
          %v371 = vld [vmem:[#allocation6 + $0x18] sm:$0xf]
          %v372 = vld [vmem:[#allocation6 + $0x1c] sm:$0xf]
          %v373 = vld [vmem:[#allocation6 + $0x20] sm:$0xf]
          %v374 = vld [vmem:[#allocation6 + $0x24] sm:$0xf]
          %v375 = vld [vmem:[#allocation6 + $0x28] sm:$0xf]
          %v376 = vld [vmem:[#allocation6 + $0x2c] sm:$0xf]
          %v377 = vld [vmem:[#allocation6 + $0x30] sm:$0xf]
          %v378 = vld [vmem:[#allocation6 + $0x34] sm:$0xf]
          %v379 = vld [vmem:[#allocation6 + $0x38] sm:$0xf]
          %v380 = vld [vmem:[#allocation6 + $0x3c] sm:$0xf]
          %v397 = vunpack.c.l.b16 %v365
          %v398 = vunpack.c.l.b16 %v366
          %v399 = vunpack.c.l.b16 %v367
          %v400 = vunpack.c.l.b16 %v368
          %v401 = vunpack.c.l.b16 %v369
          %v402 = vunpack.c.l.b16 %v370
          %v403 = vunpack.c.l.b16 %v371
          %v404 = vunpack.c.l.b16 %v372
          %v405 = vunpack.c.l.b16 %v373
          %v406 = vunpack.c.l.b16 %v374
          %v407 = vunpack.c.l.b16 %v375
          %v408 = vunpack.c.l.b16 %v376
          %v409 = vunpack.c.l.b16 %v377
          %v410 = vunpack.c.l.b16 %v378
          %v411 = vunpack.c.l.b16 %v379
          %v412 = vunpack.c.l.b16 %v380
          %v413 = vpack.c.b16 %v398, %v397
          %v414 = vpack.c.b16 %v400, %v399
          %v415 = vpack.c.b16 %v402, %v401
          %v416 = vpack.c.b16 %v404, %v403
          %v417 = vpack.c.b16 %v406, %v405
          %v418 = vpack.c.b16 %v408, %v407
          %v419 = vpack.c.b16 %v410, %v409
          %v420 = vpack.c.b16 %v412, %v411
          %429 = vmatprep.subr.bf16.mxu0 0
          %430 = vmatpush1.bf16.msra.mxu0 %v420
          %431 = vmatprep.subr.bf16.mxu0 0
          %432 = vmatpush1.bf16.msra.mxu0 %v419
          %433 = vmatprep.subr.bf16.mxu0 0
          %434 = vmatpush1.bf16.msra.mxu0 %v418
          %435 = vmatprep.subr.bf16.mxu0 0
          %436 = vmatpush1.bf16.msra.mxu0 %v417
          %437 = vmatprep.subr.bf16.mxu0 0
          %438 = vmatpush1.bf16.msra.mxu0 %v416
          %439 = vmatprep.subr.bf16.mxu0 0
          %440 = vmatpush1.bf16.msra.mxu0 %v415
          %441 = vmatprep.subr.bf16.mxu0 0
          %442 = vmatpush1.bf16.msra.mxu0 %v414
          %443 = vmatprep.subr.bf16.mxu0 0
          %444 = vmatpush1.bf16.msra.mxu0 %v413
          %445 = vmatprep.subr.bf16.mxu0 0
          %446 = vmatpush2.bf16.msra.mxu0 0
          %447 = vmatprep.subr.bf16.mxu0 0
          %448 = vmatpush2.bf16.msra.mxu0 0
          %449 = vmatprep.subr.bf16.mxu0 0
          %450 = vmatpush2.bf16.msra.mxu0 0
          %451 = vmatprep.subr.bf16.mxu0 0
          %452 = vmatpush2.bf16.msra.mxu0 0
          %453 = vmatprep.subr.bf16.mxu0 0
          %454 = vmatpush2.bf16.msra.mxu0 0
          %455 = vmatprep.subr.bf16.mxu0 0
          %456 = vmatpush2.bf16.msra.mxu0 0
          %457 = vmatprep.subr.bf16.mxu0 0
          %458 = vmatpush2.bf16.msra.mxu0 0
          %459 = vmatprep.subr.bf16.mxu0 0
          %460 = vmatpush2.bf16.msra.mxu0 0
          %461 = vmatprep.mubr.bf16.mxu0 0
          %462 = vmatmul.mubr.bf16.gmra.mxu0 %v359
          %v463 = vpop.f32.mrf.mxu0
          %v464 = vadd.f32 0.0, %v463
          %v465 = vpop.f32.mrf.mxu0
          %v466 = vpop.f32.mrf.mxu0
          %v467 = vpop.f32.mrf.mxu0
          %468 = vdwg.mxu0
          %v470 = vlaneseq
          %v471 = vshrl.u32 %v470, 7
          %v472 = vsub.s32 0, %v471
          %v473 = vrot.slane %v364, %v472
          %v475 = vadd.f32 %v473, %v464
          %476 = vst [vmem:[#allocation2] sm:$0xff] %v475
        $region64: #{tpu_custom_call.1} parent=43 // pred_fallthru
          _
        %v477 = vld [vmem:[%s314] sm:$0xf]
        %v478 = vld [vmem:[%s314 + $0x4] sm:$0xf]
        %v479 = vld [vmem:[%s314 + $0x8] sm:$0xf]
        %v480 = vld [vmem:[%s314 + $0xc] sm:$0xf]
        %v481 = vld [vmem:[%s314 + $0x10] sm:$0xf]
        %v482 = vld [vmem:[%s314 + $0x14] sm:$0xf]
        %v483 = vld [vmem:[%s314 + $0x18] sm:$0xf]
        %v484 = vld [vmem:[%s314 + $0x1c] sm:$0xf]
        %v485 = vld [vmem:[%s314 + $0x20] sm:$0xf]
        %v486 = vld [vmem:[%s314 + $0x24] sm:$0xf]
        %v487 = vld [vmem:[%s314 + $0x28] sm:$0xf]
        %v488 = vld [vmem:[%s314 + $0x2c] sm:$0xf]
        %v489 = vld [vmem:[%s314 + $0x30] sm:$0xf]
        %v490 = vld [vmem:[%s314 + $0x34] sm:$0xf]
        %v491 = vld [vmem:[%s314 + $0x38] sm:$0xf]
        %v492 = vld [vmem:[%s314 + $0x3c] sm:$0xf]
        %v493 = vld [vmem:[%s357] sm:$0x1]
        %v495 = vlaneseq
        %v496 = vshrl.u32 %v495, 7
        %v497 = vsub.s32 0, %v496
        %v498 = vrot.slane %v493, %v497
        %v516 = vunpack.c.l.b16 %v477
        %v517 = vunpack.c.l.b16 %v478
        %v518 = vunpack.c.l.b16 %v479
        %v519 = vunpack.c.l.b16 %v480
        %v520 = vunpack.c.l.b16 %v481
        %v521 = vunpack.c.l.b16 %v482
        %v522 = vunpack.c.l.b16 %v483
        %v523 = vunpack.c.l.b16 %v484
        %v524 = vunpack.c.l.b16 %v485
        %v525 = vunpack.c.l.b16 %v486
        %v526 = vunpack.c.l.b16 %v487
        %v527 = vunpack.c.l.b16 %v488
        %v528 = vunpack.c.l.b16 %v489
        %v529 = vunpack.c.l.b16 %v490
        %v530 = vunpack.c.l.b16 %v491
        %v531 = vunpack.c.l.b16 %v492
        %v532 = vpack.c.b16 %v517, %v516
        %v533 = vpack.c.b16 %v519, %v518
        %v534 = vpack.c.b16 %v521, %v520
        %v535 = vpack.c.b16 %v523, %v522
        %v536 = vpack.c.b16 %v525, %v524
        %v537 = vpack.c.b16 %v527, %v526
        %v538 = vpack.c.b16 %v529, %v528
        %v539 = vpack.c.b16 %v531, %v530
        %548 = vmatprep.subr.bf16.mxu0 0
        %549 = vmatpush1.bf16.msra.mxu0 %v539
        %550 = vmatprep.subr.bf16.mxu0 0
        %551 = vmatpush1.bf16.msra.mxu0 %v538
        %552 = vmatprep.subr.bf16.mxu0 0
        %553 = vmatpush1.bf16.msra.mxu0 %v537
        %554 = vmatprep.subr.bf16.mxu0 0
        %555 = vmatpush1.bf16.msra.mxu0 %v536
        %556 = vmatprep.subr.bf16.mxu0 0
        %557 = vmatpush1.bf16.msra.mxu0 %v535
        %558 = vmatprep.subr.bf16.mxu0 0
        %559 = vmatpush1.bf16.msra.mxu0 %v534
        %560 = vmatprep.subr.bf16.mxu0 0
        %561 = vmatpush1.bf16.msra.mxu0 %v533
        %562 = vmatprep.subr.bf16.mxu0 0
        %563 = vmatpush1.bf16.msra.mxu0 %v532
        %564 = vmatprep.subr.bf16.mxu0 0
        %565 = vmatpush2.bf16.msra.mxu0 0
        %566 = vmatprep.subr.bf16.mxu0 0
        %567 = vmatpush2.bf16.msra.mxu0 0
        %568 = vmatprep.subr.bf16.mxu0 0
        %569 = vmatpush2.bf16.msra.mxu0 0
        %570 = vmatprep.subr.bf16.mxu0 0
        %571 = vmatpush2.bf16.msra.mxu0 0
        %572 = vmatprep.subr.bf16.mxu0 0
        %573 = vmatpush2.bf16.msra.mxu0 0
        %574 = vmatprep.subr.bf16.mxu0 0
        %575 = vmatpush2.bf16.msra.mxu0 0
        %576 = vmatprep.subr.bf16.mxu0 0
        %577 = vmatpush2.bf16.msra.mxu0 0
        %578 = vmatprep.subr.bf16.mxu0 0
        %579 = vmatpush2.bf16.msra.mxu0 0
        %580 = vmatprep.mubr.bf16.mxu0 0
        %581 = vmatmul.mubr.bf16.gmra.mxu0 %v359
        %v582 = vpop.f32.mrf.mxu0
        %v583 = vadd.f32 %v498, %v582
        %v584 = vpop.f32.mrf.mxu0
        %v585 = vpop.f32.mrf.mxu0
        %v586 = vpop.f32.mrf.mxu0
        %587 = vdwg.mxu0
        %v588 = vand.u32 2147483647, %v583
        %v589 = vmul.f32 %v588, -2.0
        %v590 = vmul.f32 %v589, 1.442695
        %v591 = vpow.pop %v590
        %v592 = vadd.f32 %v591, 1.0
        %v593 = vlog2.pop %v592
        %v594 = vmul.f32 %v593, 0.6931472
        %v595 = vmul.f32 -0.5, %v591
        %v596 = vadd.f32 %v595, 1.0
        %v597 = vmul.f32 %v596, %v591
        %v598 = vand.u32 2147483647, %v591
        %vm599 = vcmp.lt.f32.partialorder %v598, 0.0004427343
        %v600 = vsel %vm599, %v597, %v594
        %v601 = vadd.f32 %v588, %v600
        %v602 = vsub.f32 %v601, 0.6931472
        %603 = vadd.xlane.f32.xlu0 %v602
        %v604 = vpop.xlane.xlu0 %603
        %v605 = vtanh.pop %v583
        %v606 = vpack.c.bf16 %v605, %v605
        %v607 = vld [vmem:[%s323] sm:$0xf]
        %v608 = vld [vmem:[%s323 + $0x4] sm:$0xf]
        %v609 = vld [vmem:[%s323 + $0x8] sm:$0xf]
        %v610 = vld [vmem:[%s323 + $0xc] sm:$0xf]
        %v611 = vld [vmem:[%s323 + $0x10] sm:$0xf]
        %v612 = vld [vmem:[%s323 + $0x14] sm:$0xf]
        %v613 = vld [vmem:[%s323 + $0x18] sm:$0xf]
        %v614 = vld [vmem:[%s323 + $0x1c] sm:$0xf]
        %v615 = vld [vmem:[%s323 + $0x20] sm:$0xf]
        %v616 = vld [vmem:[%s323 + $0x24] sm:$0xf]
        %v617 = vld [vmem:[%s323 + $0x28] sm:$0xf]
        %v618 = vld [vmem:[%s323 + $0x2c] sm:$0xf]
        %v619 = vld [vmem:[%s323 + $0x30] sm:$0xf]
        %v620 = vld [vmem:[%s323 + $0x34] sm:$0xf]
        %v621 = vld [vmem:[%s323 + $0x38] sm:$0xf]
        %v622 = vld [vmem:[%s323 + $0x3c] sm:$0xf]
        %v639 = vunpack.c.l.b16 %v607
        %v640 = vunpack.c.l.b16 %v608
        %v641 = vunpack.c.l.b16 %v609
        %v642 = vunpack.c.l.b16 %v610
        %v643 = vunpack.c.l.b16 %v611
        %v644 = vunpack.c.l.b16 %v612
        %v645 = vunpack.c.l.b16 %v613
        %v646 = vunpack.c.l.b16 %v614
        %v647 = vunpack.c.l.b16 %v615
        %v648 = vunpack.c.l.b16 %v616
        %v649 = vunpack.c.l.b16 %v617
        %v650 = vunpack.c.l.b16 %v618
        %v651 = vunpack.c.l.b16 %v619
        %v652 = vunpack.c.l.b16 %v620
        %v653 = vunpack.c.l.b16 %v621
        %v654 = vunpack.c.l.b16 %v622
        %v655 = vpack.c.b16 %v640, %v639
        %v656 = vpack.c.b16 %v642, %v641
        %v657 = vpack.c.b16 %v644, %v643
        %v658 = vpack.c.b16 %v646, %v645
        %v659 = vpack.c.b16 %v648, %v647
        %v660 = vpack.c.b16 %v650, %v649
        %v661 = vpack.c.b16 %v652, %v651
        %v662 = vpack.c.b16 %v654, %v653
        %671 = vmatprep.subr.bf16.mxu0 0
        %672 = vmatpush1.bf16.msra.mxu0 %v662
        %673 = vmatprep.subr.bf16.mxu0 0
        %674 = vmatpush1.bf16.msra.mxu0 %v661
        %675 = vmatprep.subr.bf16.mxu0 0
        %676 = vmatpush1.bf16.msra.mxu0 %v660
        %677 = vmatprep.subr.bf16.mxu0 0
        %678 = vmatpush1.bf16.msra.mxu0 %v659
        %679 = vmatprep.subr.bf16.mxu0 0
        %680 = vmatpush1.bf16.msra.mxu0 %v658
        %681 = vmatprep.subr.bf16.mxu0 0
        %682 = vmatpush1.bf16.msra.mxu0 %v657
        %683 = vmatprep.subr.bf16.mxu0 0
        %684 = vmatpush1.bf16.msra.mxu0 %v656
        %685 = vmatprep.subr.bf16.mxu0 0
        %686 = vmatpush1.bf16.msra.mxu0 %v655
        %687 = vmatprep.subr.bf16.mxu0 0
        %688 = vmatpush2.bf16.msra.mxu0 0
        %689 = vmatprep.subr.bf16.mxu0 0
        %690 = vmatpush2.bf16.msra.mxu0 0
        %691 = vmatprep.subr.bf16.mxu0 0
        %692 = vmatpush2.bf16.msra.mxu0 0
        %693 = vmatprep.subr.bf16.mxu0 0
        %694 = vmatpush2.bf16.msra.mxu0 0
        %695 = vmatprep.subr.bf16.mxu0 0
        %696 = vmatpush2.bf16.msra.mxu0 0
        %697 = vmatprep.subr.bf16.mxu0 0
        %698 = vmatpush2.bf16.msra.mxu0 0
        %699 = vmatprep.subr.bf16.mxu0 0
        %700 = vmatpush2.bf16.msra.mxu0 0
        %701 = vmatprep.subr.bf16.mxu0 0
        %702 = vmatpush2.bf16.msra.mxu0 0
        %703 = vmatprep.mubr.bf16.mxu0 0
        %704 = vmatmul.mubr.bf16.gmra.mxu0 %v606
        %v705 = vpop.f32.mrf.mxu0
        %v706 = vadd.f32 0.0, %v705
        %v707 = vpop.f32.mrf.mxu0
        %v708 = vpop.f32.mrf.mxu0
        %v709 = vpop.f32.mrf.mxu0
        %710 = vdwg.mxu0
        %v711 = vld [vmem:[#allocation2] sm:$0xff]
        %v712 = vmul.f32 %v604, %v706
        %v713 = vadd.f32 %v711, %v712
        %714 = vst [vmem:[#allocation2] sm:$0xff] %v713
        %p715 = scmp.eq.s32.totalorder %s25, 2
        // Predicated region
        $region65: #{tpu_custom_call.1} parent=43 // pred_check
          %p716 = pneg %p715
        $region66: #{tpu_custom_call.1} parent=43 // pred_check_branch
          %718 = sbr.rel (%p716) target = $region68
        $region67: #{tpu_custom_call.1} parent=43 // pred_region
          %v719 = vld [vmem:[#allocation2] sm:$0xff]
          %720 = vst [vmem:[#allocation10] sm:$0xff] %v719
        $region68: #{tpu_custom_call.1} parent=43 // pred_fallthru
          _
        // Predicated region
        $region69: #{tpu_custom_call.1} parent=43 // pred_check
          %p721 = pneg %p196
        $region70: #{tpu_custom_call.1} parent=43 // pred_check_branch
          %723 = sbr.rel (%p721) target = $region72
        $region71: #{tpu_custom_call.1} parent=43 // pred_region
          %s725 = ssub.s32 128, 128
          %726 = vsyncadd [#allocation5], %s725
          %s727 = smul.addr %s24, 128
          %s728 = scalar_lea.hbm %s6, %s727
          %s730 = sshll.u32 [#allocation10], 4
          %s731 = int_to_ptr.vmem [resolvable:$true] %s730
          %733 = dma.vmem_to_hbm [thread:$0]  %s731, 128, %s728, [#allocation5]
        $region72: #{tpu_custom_call.1} parent=43 // pred_fallthru
          _
        // Predicated region
        $region73: #{tpu_custom_call.1} parent=43 // pred_check
          %p734 = pneg %p196
        $region74: #{tpu_custom_call.1} parent=43 // pred_check_branch
          %736 = sbr.rel (%p734) target = $region76
        $region75: #{tpu_custom_call.1} parent=43 // pred_region
          %737 = dma.done [#allocation5], 128
        $region76: #{tpu_custom_call.1} parent=43 // pred_fallthru
          _
      $region44: #{tpu_custom_call.1} parent=5 // pred_fallthru
        _
      %p738 = scmp.le.s32.totalorder 2, %s15
      // Predicated region
      $region77: #{tpu_custom_call.1} parent=5 // pred_check
        %p739 = pneg %p738
      $region78: #{tpu_custom_call.1} parent=5 // pred_check_branch
        %741 = sbr.rel (%p739) target = $region80
      $region79: #{tpu_custom_call.1} parent=5 // pred_region
        %s742 = ssub.s32 %s15, 2
      $region80: #{tpu_custom_call.1} parent=5 // pred_fallthru
        _
    $region6: #{tpu_custom_call.1} parent=1 // loop_footer
      %s19 = sadd.s32 1, %s15
    $region7: #{tpu_custom_call.1} parent=1 // loop_footer_branch
      %14 = sbr.rel target = $region3
    $region8: #{tpu_custom_call.1} parent=1 // loop_exit
      _
    %743 = vsyncpa [#allocation4], 1
    %s744 = scalar_lea.sflag [#allocation4], 1
    %745 = vsyncpa %s744, 1
    %746 = vsyncpa [#allocation7], 1
    %747 = vsyncpa [#allocation5], 1
    %s748 = scalar_lea.sflag [#allocation5], 1
    %749 = vsyncpa %s748, 1

</llo_original>
